<compile_context>
chip_gen: v5e
topology: v5e:2x2
jax: 0.10.0
libtpu: 0.0.40
codegen_flags: <defaults>
</compile_context>

<pallas_src>
import jax
import jax.numpy as jnp
from jax.experimental import pallas as pl
from jax.experimental.pallas import tpu as pltpu


def _round_up(x: int, m: int) -> int:
    return ((x + m - 1) // m) * m


def _pick_tile(dim_aligned: int, cap: int, align: int) -> int:
    """Largest multiple of `align` that divides dim_aligned and is <= cap."""
    cap = max(align, min(cap, dim_aligned))
    best = align
    for t in range(align, cap + 1, align):
        if dim_aligned % t == 0:
            best = t
    return best


def _pad2(a, rows, cols, dtype):
    if a.dtype != dtype:
        a = a.astype(dtype)
    pr, pc = rows - a.shape[0], cols - a.shape[1]
    if pr or pc:
        a = jnp.pad(a, ((0, pr), (0, pc)))
    return a


# ---------------------------------------------------------------------------
# Kernels
# ---------------------------------------------------------------------------
def _fused_kernel_single(inp1_ref, inp2_ref, inp3_ref, inp4_ref,
                         x1_ref, x2_ref, x3_ref, x4_ref, out_ref):
    # Whole K reduction is VMEM-resident: one matmul pair + fused epilogue.
    v1 = jnp.dot(inp1_ref[...], inp2_ref[...], preferred_element_type=jnp.float32)
    v2 = jnp.dot(inp3_ref[...], inp4_ref[...], preferred_element_type=jnp.float32)
    out_ref[...] = ((v1 + x1_ref[...]) * x3_ref[...]
                    + (v2 + x2_ref[...]) * x4_ref[...]).astype(out_ref.dtype)


def _fused_kernel_kloop(inp1_ref, inp2_ref, inp3_ref, inp4_ref,
                        x1_ref, x2_ref, x3_ref, x4_ref, out_ref, acc2_ref):
    k = pl.program_id(2)

    @pl.when(k == 0)
    def _init():
        out_ref[...] = jnp.zeros_like(out_ref)      # out tile is f32 & k-resident
        acc2_ref[...] = jnp.zeros_like(acc2_ref)

    # Hot loop: accumulate v1 directly into the resident output tile, v2 into
    # the single scratch accumulator.
    out_ref[...] += jnp.dot(inp1_ref[...], inp2_ref[...],
                            preferred_element_type=jnp.float32)
    acc2_ref[...] += jnp.dot(inp3_ref[...], inp4_ref[...],
                             preferred_element_type=jnp.float32)

    @pl.when(k == pl.num_programs(2) - 1)
    def _finalize():
        # Fused elementwise epilogue, single lane-dense writeback per (i,j).
        out_ref[...] = ((out_ref[...] + x1_ref[...]) * x3_ref[...]
                        + (acc2_ref[...] + x2_ref[...]) * x4_ref[...]
                        ).astype(out_ref.dtype)


# ---------------------------------------------------------------------------
# Wrapper
# ---------------------------------------------------------------------------
def fused_model(x1, x2, x3, x4, inp1, inp2, inp3, inp4, *,
                tm=256, tn=512, tk=None,
                matmul_dtype=jnp.bfloat16,
                vmem_budget_bytes=24 * 1024 * 1024,
                vmem_limit_bytes=32 * 1024 * 1024):
    m, kdim = inp1.shape
    k2, n = inp2.shape
    assert kdim == k2, "inp1/inp2 inner dims mismatch"
    assert inp3.shape == (m, kdim) and inp4.shape == (kdim, n)
    for xa in (x1, x2, x3, x4):
        assert xa.shape == (m, n)

    mm_bytes = jnp.dtype(matmul_dtype).itemsize

    mp = _round_up(m, 8)
    np_ = _round_up(n, 128)
    kp = _round_up(kdim, 128)

    # Tiles divide the aligned dims -> only (8,128) alignment padding, never
    # extra tile padding (no dead MXU flops, no extra jnp.pad HBM copies).
    tm = _pick_tile(mp, tm, 8)
    tn = _pick_tile(np_, tn, 128)

    # VMEM budget for tk:   A/B double-buffered (bf16 by default)
    #                     + 4 x-tiles + out (double-buffered, f32) + acc scratch.
    fixed = (2 * 4 + 2 + 1) * tm * tn * 4
    per_tk = 2 * 2 * (tm + tn) * mm_bytes
    tk_budget_max = max(128, (vmem_budget_bytes - fixed) // per_tk)
    tk_cap = kp if tk is None else tk
    tk = _pick_tile(kp, min(tk_cap, tk_budget_max), 128)

    gi, gj, gk = mp // tm, np_ // tn, kp // tk

    inp1p = _pad2(inp1, mp, kp, matmul_dtype)
    inp2p = _pad2(inp2, kp, np_, matmul_dtype)
    inp3p = _pad2(inp3, mp, kp, matmul_dtype)
    inp4p = _pad2(inp4, kp, np_, matmul_dtype)
    x1p = _pad2(x1, mp, np_, jnp.float32)
    x2p = _pad2(x2, mp, np_, jnp.float32)
    x3p = _pad2(x3, mp, np_, jnp.float32)
    x4p = _pad2(x4, mp, np_, jnp.float32)

    # A is re-read gj times, B is re-read gi times; x1..x4 once; out written once.
    cost = pl.CostEstimate(
        flops=4 * mp * np_ * kp,
        transcendentals=0,
        bytes_accessed=(2 * gj * mp * kp + 2 * gi * kp * np_) * mm_bytes
                       + 4 * mp * np_ * 4 + mp * np_ * 4,
    )

    if gk == 1:
        # Whole K resident: 2-D grid, no accumulator, no k loop.
        a_spec = pl.BlockSpec((tm, tk), lambda i, j: (i, 0))
        b_spec = pl.BlockSpec((tk, tn), lambda i, j: (0, j))
        x_spec = pl.BlockSpec((tm, tn), lambda i, j: (i, j))
        out_padded = pl.pallas_call(
            _fused_kernel_single,
            out_shape=jax.ShapeDtypeStruct((mp, np_), jnp.float32),
            grid_spec=pltpu.PrefetchScalarGridSpec(
                num_scalar_prefetch=0,
                grid=(gi, gj),
                in_specs=[a_spec, b_spec, a_spec, b_spec,
                          x_spec, x_spec, x_spec, x_spec],
                out_specs=x_spec,
            ),
            compiler_params=pltpu.CompilerParams(
                dimension_semantics=("parallel", "parallel"),
                vmem_limit_bytes=vmem_limit_bytes,
            ),
            cost_estimate=cost,
        )(inp1p, inp2p, inp3p, inp4p, x1p, x2p, x3p, x4p)
    else:
        # K split: 3-D grid, k innermost, out tile k-resident (acc for v1),
        # one scratch accumulator for v2.
        a_spec = pl.BlockSpec((tm, tk), lambda i, j, k: (i, k))
        b_spec = pl.BlockSpec((tk, tn), lambda i, j, k: (k, j))
        x_spec = pl.BlockSpec((tm, tn), lambda i, j, k: (i, j))
        out_padded = pl.pallas_call(
            _fused_kernel_kloop,
            out_shape=jax.ShapeDtypeStruct((mp, np_), jnp.float32),
            grid_spec=pltpu.PrefetchScalarGridSpec(
                num_scalar_prefetch=0,
                grid=(gi, gj, gk),
                in_specs=[a_spec, b_spec, a_spec, b_spec,
                          x_spec, x_spec, x_spec, x_spec],
                out_specs=x_spec,
                scratch_shapes=[pltpu.VMEM((tm, tn), jnp.float32)],
            ),
            compiler_params=pltpu.CompilerParams(
                dimension_semantics=("parallel", "parallel", "arbitrary"),
                vmem_limit_bytes=vmem_limit_bytes,
            ),
            cost_estimate=cost,
        )(inp1p, inp2p, inp3p, inp4p, x1p, x2p, x3p, x4p)

    if mp == m and np_ == n:
        return out_padded
    return out_padded[:m, :n]


# ---------------------------------------------------------------------------
# Reference (matches the PyTorch forward; casts matmul operands the same way
# as the kernel so bf16 runs can be checked tightly)
# ---------------------------------------------------------------------------
def _reference(x1, x2, x3, x4, inp1, inp2, inp3, inp4,
               matmul_dtype=jnp.bfloat16):
    hi = jax.lax.Precision.HIGHEST
    a1 = inp1.astype(matmul_dtype).astype(jnp.float32)
    a2 = inp2.astype(matmul_dtype).astype(jnp.float32)
    a3 = inp3.astype(matmul_dtype).astype(jnp.float32)
    a4 = inp4.astype(matmul_dtype).astype(jnp.float32)
    v1 = jnp.dot(a1, a2, precision=hi)
    v2 = jnp.dot(a3, a4, precision=hi)
    return (v1 + x1) * x3 + (v2 + x2) * x4


if __name__ == "__main__":
    key = jax.random.PRNGKey(0)
    keys = jax.random.split(key, 16)

    # --- Case 1: exact spec shapes (3x3), padded internally to one (8,128)
    #     tile, default bf16 MXU path (single-k kernel, grid (1,1)).
    small = [jax.random.normal(k, (3, 3), dtype=jnp.float32) for k in keys[:8]]
    out_small = jax.block_until_ready(fused_model(*small))
    ref_small = _reference(*small, matmul_dtype=jnp.bfloat16)
    assert out_small.shape == ref_small.shape
    assert jnp.allclose(out_small, ref_small, atol=1e-3, rtol=1e-3)

    # --- Case 1b: f32 operand path still available for tight numerics.
    out_small_f32 = jax.block_until_ready(
        fused_model(*small, matmul_dtype=jnp.float32))
    ref_small_f32 = _reference(*small, matmul_dtype=jnp.float32)
    assert jnp.allclose(out_small_f32, ref_small_f32, atol=2e-3, rtol=2e-3)

    # --- Case 2: larger problem.  K=640 fits the VMEM budget, so the whole
    #     reduction is resident (2-D grid, no k loop); tiles divide the dims
    #     exactly (tm=192, tn=512, tk=640) -> no padding, grid (2,1) feeds
    #     both v7x TensorCores.
    M, K, N = 384, 640, 512
    x1 = jax.random.normal(keys[8], (M, N), dtype=jnp.float32)
    x2 = jax.random.normal(keys[9], (M, N), dtype=jnp.float32)
    x3 = jax.random.normal(keys[10], (M, N), dtype=jnp.float32)
    x4 = jax.random.normal(keys[11], (M, N), dtype=jnp.float32)
    inp1 = jax.random.normal(keys[12], (M, K), dtype=jnp.float32)
    inp2 = jax.random.normal(keys[13], (K, N), dtype=jnp.float32)
    inp3 = jax.random.normal(keys[14], (M, K), dtype=jnp.float32)
    inp4 = jax.random.normal(keys[15], (K, N), dtype=jnp.float32)

    out_big = jax.block_until_ready(
        fused_model(x1, x2, x3, x4, inp1, inp2, inp3, inp4))
    ref_big = _reference(x1, x2, x3, x4, inp1, inp2, inp3, inp4,
                         matmul_dtype=jnp.bfloat16)
    assert out_big.shape == ref_big.shape
    assert jnp.allclose(out_big, ref_big, atol=1e-3, rtol=1e-3)

    # --- Case 3: force the k-loop accumulator path (tk capped to 128 -> 5 k
    #     steps, still an exact divisor of K so no padding).
    out_big_kloop = jax.block_until_ready(
        fused_model(x1, x2, x3, x4, inp1, inp2, inp3, inp4, tk=128))
    assert jnp.allclose(out_big_kloop, ref_big, atol=1e-3, rtol=1e-3)

    print("KERNEL_OK")
</pallas_src>

<mosaic_0001>
module attributes {stable_mosaic.version = 11 : i64} {
  func.func @_fused_kernel_single(%arg0: i32, %arg1: i32, %arg2: memref<8x128xbf16, #tpu.memory_space<vmem>>, %arg3: memref<128x128xbf16, #tpu.memory_space<vmem>>, %arg4: memref<8x128xbf16, #tpu.memory_space<vmem>>, %arg5: memref<128x128xbf16, #tpu.memory_space<vmem>>, %arg6: memref<8x128xf32, #tpu.memory_space<vmem>>, %arg7: memref<8x128xf32, #tpu.memory_space<vmem>>, %arg8: memref<8x128xf32, #tpu.memory_space<vmem>>, %arg9: memref<8x128xf32, #tpu.memory_space<vmem>>, %arg10: memref<8x128xf32, #tpu.memory_space<vmem>>) attributes {dimension_semantics = [#tpu.dimension_semantics<parallel>, #tpu.dimension_semantics<parallel>], iteration_bounds = array<i64: 1, 1>, scalar_prefetch = 0 : i64, scratch_operands = 0 : i64, tpu.core_type = #tpu.core_type<tc>, window_params = [{transform_indices = @transform_0, window_bounds = array<i64: 8, 128>}, {transform_indices = @transform_1, window_bounds = array<i64: 128, 128>}, {transform_indices = @transform_2, window_bounds = array<i64: 8, 128>}, {transform_indices = @transform_3, window_bounds = array<i64: 128, 128>}, {transform_indices = @transform_4, window_bounds = array<i64: 8, 128>}, {transform_indices = @transform_5, window_bounds = array<i64: 8, 128>}, {transform_indices = @transform_6, window_bounds = array<i64: 8, 128>}, {transform_indices = @transform_7, window_bounds = array<i64: 8, 128>}, {transform_indices = @transform_8, window_bounds = array<i64: 8, 128>}]} {
    %c0 = arith.constant 0 : index
    %c0_0 = arith.constant 0 : index
    %0 = vector.load %arg2[%c0, %c0_0] : memref<8x128xbf16, #tpu.memory_space<vmem>>, vector<8x128xbf16>
    %c0_1 = arith.constant 0 : index
    %c0_2 = arith.constant 0 : index
    %1 = vector.load %arg3[%c0_1, %c0_2] : memref<128x128xbf16, #tpu.memory_space<vmem>>, vector<128x128xbf16>
    %cst = arith.constant dense<0.000000e+00> : vector<8x128xf32>
    %2 = tpu.matmul %0, %1, %cst {dimension_numbers = #tpu.dot_dimension_numbers<[1], [0], [0], [1], [0, 0, 1, 1], [], []>} : vector<8x128xbf16>, vector<128x128xbf16>, vector<8x128xf32> -> vector<8x128xf32>
    %c0_3 = arith.constant 0 : index
    %c0_4 = arith.constant 0 : index
    %3 = vector.load %arg4[%c0_3, %c0_4] : memref<8x128xbf16, #tpu.memory_space<vmem>>, vector<8x128xbf16>
    %c0_5 = arith.constant 0 : index
    %c0_6 = arith.constant 0 : index
    %4 = vector.load %arg5[%c0_5, %c0_6] : memref<128x128xbf16, #tpu.memory_space<vmem>>, vector<128x128xbf16>
    %cst_7 = arith.constant dense<0.000000e+00> : vector<8x128xf32>
    %5 = tpu.matmul %3, %4, %cst_7 {dimension_numbers = #tpu.dot_dimension_numbers<[1], [0], [0], [1], [0, 0, 1, 1], [], []>} : vector<8x128xbf16>, vector<128x128xbf16>, vector<8x128xf32> -> vector<8x128xf32>
    %c0_8 = arith.constant 0 : index
    %c0_9 = arith.constant 0 : index
    %6 = vector.load %arg6[%c0_8, %c0_9] : memref<8x128xf32, #tpu.memory_space<vmem>>, vector<8x128xf32>
    %7 = arith.addf %2, %6 : vector<8x128xf32>
    %c0_10 = arith.constant 0 : index
    %c0_11 = arith.constant 0 : index
    %8 = vector.load %arg8[%c0_10, %c0_11] : memref<8x128xf32, #tpu.memory_space<vmem>>, vector<8x128xf32>
    %9 = arith.mulf %7, %8 : vector<8x128xf32>
    %c0_12 = arith.constant 0 : index
    %c0_13 = arith.constant 0 : index
    %10 = vector.load %arg7[%c0_12, %c0_13] : memref<8x128xf32, #tpu.memory_space<vmem>>, vector<8x128xf32>
    %11 = arith.addf %5, %10 : vector<8x128xf32>
    %c0_14 = arith.constant 0 : index
    %c0_15 = arith.constant 0 : index
    %12 = vector.load %arg9[%c0_14, %c0_15] : memref<8x128xf32, #tpu.memory_space<vmem>>, vector<8x128xf32>
    %13 = arith.mulf %11, %12 : vector<8x128xf32>
    %14 = arith.addf %9, %13 : vector<8x128xf32>
    %c0_16 = arith.constant 0 : index
    %c0_17 = arith.constant 0 : index
    %15 = vector.load %arg10[%c0_16, %c0_17] : memref<8x128xf32, #tpu.memory_space<vmem>>, vector<8x128xf32>
    tpu.vector_store %arg10[%c0_16, %c0_17], %14 {strides = array<i32>} : memref<8x128xf32, #tpu.memory_space<vmem>>, vector<8x128xf32>,
    return
  }
  func.func @transform_0(%arg0: i32, %arg1: i32) -> (i32, i32) {
    %c0_i32 = arith.constant 0 : i32
    %c0_i32_0 = arith.constant 0 : i32
    return %arg0, %c0_i32 : i32, i32
  }
  func.func @transform_1(%arg0: i32, %arg1: i32) -> (i32, i32) {
    %c0_i32 = arith.constant 0 : i32
    %c0_i32_0 = arith.constant 0 : i32
    return %c0_i32, %arg1 : i32, i32
  }
  func.func @transform_2(%arg0: i32, %arg1: i32) -> (i32, i32) {
    %c0_i32 = arith.constant 0 : i32
    %c0_i32_0 = arith.constant 0 : i32
    return %arg0, %c0_i32 : i32, i32
  }
  func.func @transform_3(%arg0: i32, %arg1: i32) -> (i32, i32) {
    %c0_i32 = arith.constant 0 : i32
    %c0_i32_0 = arith.constant 0 : i32
    return %c0_i32, %arg1 : i32, i32
  }
  func.func @transform_4(%arg0: i32, %arg1: i32) -> (i32, i32) {
    %c0_i32 = arith.constant 0 : i32
    return %arg0, %arg1 : i32, i32
  }
  func.func @transform_5(%arg0: i32, %arg1: i32) -> (i32, i32) {
    %c0_i32 = arith.constant 0 : i32
    return %arg0, %arg1 : i32, i32
  }
  func.func @transform_6(%arg0: i32, %arg1: i32) -> (i32, i32) {
    %c0_i32 = arith.constant 0 : i32
    return %arg0, %arg1 : i32, i32
  }
  func.func @transform_7(%arg0: i32, %arg1: i32) -> (i32, i32) {
    %c0_i32 = arith.constant 0 : i32
    return %arg0, %arg1 : i32, i32
  }
  func.func @transform_8(%arg0: i32, %arg1: i32) -> (i32, i32) {
    %c0_i32 = arith.constant 0 : i32
    return %arg0, %arg1 : i32, i32
  }
}

</mosaic_0001>

<llo_original>
// kernel: tpu_custom_call.1
$region0: #{tpu_custom_call.1}
  #allocation0 [shape = 'u32[]', space=smem, size = 0x4, offset = 0x4, fixed_abs, tag = 'smem constant byte address 0x4 - core index']
  #allocation1 [shape = 'u32[72,128]{1,0:T(1,128)}', space=vmem, size = 0x9000, scoped, tag = 'internal scratch']
  %s0 = inlined_call_operand.hbm [shape: bf16[8,128], index: 0, kind: input, shape index: {}]
  %s1 = inlined_call_operand.hbm [shape: bf16[128,128], index: 1, kind: input, shape index: {}]
  %s2 = inlined_call_operand.hbm [shape: bf16[8,128], index: 2, kind: input, shape index: {}]
  %s3 = inlined_call_operand.hbm [shape: bf16[128,128], index: 3, kind: input, shape index: {}]
  %s4 = inlined_call_operand.hbm [shape: f32[8,128], index: 4, kind: input, shape index: {}]
  %s5 = inlined_call_operand.hbm [shape: f32[8,128], index: 5, kind: input, shape index: {}]
  %s6 = inlined_call_operand.hbm [shape: f32[8,128], index: 6, kind: input, shape index: {}]
  %s7 = inlined_call_operand.hbm [shape: f32[8,128], index: 7, kind: input, shape index: {}]
  %s8 = inlined_call_operand.hbm [shape: f32[8,128], index: 8, kind: output, shape index: {}]
  %s9 = sld [smem:[#allocation0]]
  $region74: #{tpu_custom_call.1} parent=0
    _
  %s11 = ssub.s32 1, %s9
  %s12 = scalar_select 0, %s11, %s9
  $region1: #{tpu_custom_call.1} parent=0
    #allocation2 [shape = 'u8[2048]{0}', space=vmem, size = 0x800, scoped, tag = 'input window, operand 0, single buffered']
    #allocation3 [shape = 's32[1]{0}', space=sflag, size = 0x4, scoped, tag = 'scoped memory for tpu_custom_call.1']
    #allocation4 [shape = 's32[1]{0}', space=sflag, size = 0x4, scoped, tag = 'scoped memory for tpu_custom_call.1']
    #allocation5 [shape = 'u8[32768]{0}', space=vmem, size = 0x8000, scoped, tag = 'input window, operand 1, single buffered']
    #allocation6 [shape = 's32[1]{0}', space=sflag, size = 0x4, scoped, tag = 'scoped memory for tpu_custom_call.1']
    #allocation7 [shape = 'u8[2048]{0}', space=vmem, size = 0x800, scoped, tag = 'input window, operand 2, single buffered']
    #allocation8 [shape = 'u8[32768]{0}', space=vmem, size = 0x8000, scoped, tag = 'input window, operand 3, single buffered']
    #allocation9 [shape = 's32[1]{0}', space=sflag, size = 0x4, scoped, tag = 'scoped memory for tpu_custom_call.1']
    #allocation10 [shape = 'u8[4096]{0}', space=vmem, size = 0x1000, scoped, tag = 'input window, operand 4, single buffered']
    #allocation11 [shape = 'u8[4096]{0}', space=vmem, size = 0x1000, scoped, tag = 'input window, operand 5, single buffered']
    #allocation12 [shape = 's32[1]{0}', space=sflag, size = 0x4, scoped, tag = 'scoped memory for tpu_custom_call.1']
    #allocation13 [shape = 'u8[4096]{0}', space=vmem, size = 0x1000, scoped, tag = 'input window, operand 6, single buffered']
    #allocation14 [shape = 'u8[4096]{0}', space=vmem, size = 0x1000, scoped, tag = 'input window, operand 7, single buffered']
    #allocation15 [shape = 's32[1]{0}', space=sflag, size = 0x4, scoped, tag = 'scoped memory for tpu_custom_call.1']
    #allocation16 [shape = 'u8[4096]{0}', space=vmem, size = 0x1000, scoped, tag = 'output window, operand 0, single buffered']
    %13 = vsyncpa [#allocation3], 0
    %14 = vsyncpa [#allocation6], 0
    %15 = vsyncpa [#allocation9], 0
    %16 = vsyncpa [#allocation12], 0
    %17 = vsyncpa [#allocation15], 0
    %18 = vsyncpa [#allocation4], 0
    // Predicated region
    $region2: #{tpu_custom_call.1} parent=1 // pred_check
      _
    $region3: #{tpu_custom_call.1} parent=1 // pred_check_branch
      %20 = sbr.rel (0) target = $region5
    $region4: #{tpu_custom_call.1} parent=1 // pred_region
      %22 = vsyncadd [#allocation3], 0
      %s24 = sshll.u32 %s0, 4
      %s25 = int_to_ptr.hbm [resolvable:$true] %s24
      %s26 = sshll.u32 [#allocation2], 4
      %s27 = int_to_ptr.vmem [resolvable:$true] %s26
      %29 = dma.hbm_to_vmem [thread:$0]  %s25, 64, %s27, [#allocation3]
    $region5: #{tpu_custom_call.1} parent=1 // pred_fallthru
      _
    // Predicated region
    $region6: #{tpu_custom_call.1} parent=1 // pred_check
      _
    $region7: #{tpu_custom_call.1} parent=1 // pred_check_branch
      %31 = sbr.rel (0) target = $region9
    $region8: #{tpu_custom_call.1} parent=1 // pred_region
      %33 = vsyncadd [#allocation6], 0
      %s34 = sshll.u32 %s1, 4
      %s35 = int_to_ptr.hbm [resolvable:$true] %s34
      %s36 = sshll.u32 [#allocation5], 4
      %s37 = int_to_ptr.vmem [resolvable:$true] %s36
      %42 = dma.hbm_to_vmem [thread:$0]  %s35, 1024, %s37, [#allocation6], 64, 64, 4
    $region9: #{tpu_custom_call.1} parent=1 // pred_fallthru
      _
    // Predicated region
    $region10: #{tpu_custom_call.1} parent=1 // pred_check
      _
    $region11: #{tpu_custom_call.1} parent=1 // pred_check_branch
      %44 = sbr.rel (0) target = $region13
    $region12: #{tpu_custom_call.1} parent=1 // pred_region
      %46 = vsyncadd [#allocation6], 0
      %s48 = sshll.u32 %s2, 4
      %s49 = int_to_ptr.hbm [resolvable:$true] %s48
      %s50 = sshll.u32 [#allocation7], 4
      %s51 = int_to_ptr.vmem [resolvable:$true] %s50
      %53 = dma.hbm_to_vmem [thread:$0]  %s49, 64, %s51, [#allocation6]
    $region13: #{tpu_custom_call.1} parent=1 // pred_fallthru
      _
    // Predicated region
    $region14: #{tpu_custom_call.1} parent=1 // pred_check
      _
    $region15: #{tpu_custom_call.1} parent=1 // pred_check_branch
      %55 = sbr.rel (0) target = $region17
    $region16: #{tpu_custom_call.1} parent=1 // pred_region
      %57 = vsyncadd [#allocation9], 0
      %s58 = sshll.u32 %s3, 4
      %s59 = int_to_ptr.hbm [resolvable:$true] %s58
      %s60 = sshll.u32 [#allocation8], 4
      %s61 = int_to_ptr.vmem [resolvable:$true] %s60
      %66 = dma.hbm_to_vmem [thread:$0]  %s59, 1024, %s61, [#allocation9], 64, 64, 4
    $region17: #{tpu_custom_call.1} parent=1 // pred_fallthru
      _
    // Predicated region
    $region18: #{tpu_custom_call.1} parent=1 // pred_check
      _
    $region19: #{tpu_custom_call.1} parent=1 // pred_check_branch
      %68 = sbr.rel (0) target = $region21
    $region20: #{tpu_custom_call.1} parent=1 // pred_region
      %70 = vsyncadd [#allocation9], 0
      %s72 = sshll.u32 %s4, 4
      %s73 = int_to_ptr.hbm [resolvable:$true] %s72
      %s74 = sshll.u32 [#allocation10], 4
      %s75 = int_to_ptr.vmem [resolvable:$true] %s74
      %77 = dma.hbm_to_vmem [thread:$0]  %s73, 128, %s75, [#allocation9]
    $region21: #{tpu_custom_call.1} parent=1 // pred_fallthru
      _
    // Predicated region
    $region22: #{tpu_custom_call.1} parent=1 // pred_check
      _
    $region23: #{tpu_custom_call.1} parent=1 // pred_check_branch
      %79 = sbr.rel (0) target = $region25
    $region24: #{tpu_custom_call.1} parent=1 // pred_region
      %81 = vsyncadd [#allocation12], 0
      %s83 = sshll.u32 %s5, 4
      %s84 = int_to_ptr.hbm [resolvable:$true] %s83
      %s85 = sshll.u32 [#allocation11], 4
      %s86 = int_to_ptr.vmem [resolvable:$true] %s85
      %88 = dma.hbm_to_vmem [thread:$0]  %s84, 128, %s86, [#allocation12]
    $region25: #{tpu_custom_call.1} parent=1 // pred_fallthru
      _
    // Predicated region
    $region26: #{tpu_custom_call.1} parent=1 // pred_check
      _
    $region27: #{tpu_custom_call.1} parent=1 // pred_check_branch
      %90 = sbr.rel (0) target = $region29
    $region28: #{tpu_custom_call.1} parent=1 // pred_region
      %92 = vsyncadd [#allocation12], 0
      %s94 = sshll.u32 %s6, 4
      %s95 = int_to_ptr.hbm [resolvable:$true] %s94
      %s96 = sshll.u32 [#allocation13], 4
      %s97 = int_to_ptr.vmem [resolvable:$true] %s96
      %99 = dma.hbm_to_vmem [thread:$0]  %s95, 128, %s97, [#allocation12]
    $region29: #{tpu_custom_call.1} parent=1 // pred_fallthru
      _
    // Predicated region
    $region30: #{tpu_custom_call.1} parent=1 // pred_check
      _
    $region31: #{tpu_custom_call.1} parent=1 // pred_check_branch
      %101 = sbr.rel (0) target = $region33
    $region32: #{tpu_custom_call.1} parent=1 // pred_region
      %103 = vsyncadd [#allocation15], 0
      %s105 = sshll.u32 %s7, 4
      %s106 = int_to_ptr.hbm [resolvable:$true] %s105
      %s107 = sshll.u32 [#allocation14], 4
      %s108 = int_to_ptr.vmem [resolvable:$true] %s107
      %110 = dma.hbm_to_vmem [thread:$0]  %s106, 128, %s108, [#allocation15]
    $region33: #{tpu_custom_call.1} parent=1 // pred_fallthru
      _
    // Predicated region
    $region34: #{tpu_custom_call.1} parent=1 // pred_check
      _
    $region35: #{tpu_custom_call.1} parent=1 // pred_check_branch
      %112 = sbr.rel (0) target = $region37
    $region36: #{tpu_custom_call.1} parent=1 // pred_region
      %114 = dma.done [#allocation3], 64
    $region37: #{tpu_custom_call.1} parent=1 // pred_fallthru
      _
    // Predicated region
    $region38: #{tpu_custom_call.1} parent=1 // pred_check
      _
    $region39: #{tpu_custom_call.1} parent=1 // pred_check_branch
      %116 = sbr.rel (0) target = $region41
    $region40: #{tpu_custom_call.1} parent=1 // pred_region
      %118 = dma.done [#allocation6], 1024
    $region41: #{tpu_custom_call.1} parent=1 // pred_fallthru
      _
    // Predicated region
    $region42: #{tpu_custom_call.1} parent=1 // pred_check
      _
    $region43: #{tpu_custom_call.1} parent=1 // pred_check_branch
      %120 = sbr.rel (0) target = $region45
    $region44: #{tpu_custom_call.1} parent=1 // pred_region
      %122 = dma.done [#allocation6], 64
    $region45: #{tpu_custom_call.1} parent=1 // pred_fallthru
      _
    // Predicated region
    $region46: #{tpu_custom_call.1} parent=1 // pred_check
      _
    $region47: #{tpu_custom_call.1} parent=1 // pred_check_branch
      %124 = sbr.rel (0) target = $region49
    $region48: #{tpu_custom_call.1} parent=1 // pred_region
      %126 = dma.done [#allocation9], 1024
    $region49: #{tpu_custom_call.1} parent=1 // pred_fallthru
      _
    // Predicated region
    $region50: #{tpu_custom_call.1} parent=1 // pred_check
      _
    $region51: #{tpu_custom_call.1} parent=1 // pred_check_branch
      %128 = sbr.rel (0) target = $region53
    $region52: #{tpu_custom_call.1} parent=1 // pred_region
      %130 = dma.done [#allocation9], 128
    $region53: #{tpu_custom_call.1} parent=1 // pred_fallthru
      _
    // Predicated region
    $region54: #{tpu_custom_call.1} parent=1 // pred_check
      _
    $region55: #{tpu_custom_call.1} parent=1 // pred_check_branch
      %132 = sbr.rel (0) target = $region57
    $region56: #{tpu_custom_call.1} parent=1 // pred_region
      %134 = dma.done [#allocation12], 128
    $region57: #{tpu_custom_call.1} parent=1 // pred_fallthru
      _
    // Predicated region
    $region58: #{tpu_custom_call.1} parent=1 // pred_check
      _
    $region59: #{tpu_custom_call.1} parent=1 // pred_check_branch
      %136 = sbr.rel (0) target = $region61
    $region60: #{tpu_custom_call.1} parent=1 // pred_region
      %138 = dma.done [#allocation12], 128
    $region61: #{tpu_custom_call.1} parent=1 // pred_fallthru
      _
    // Predicated region
    $region62: #{tpu_custom_call.1} parent=1 // pred_check
      _
    $region63: #{tpu_custom_call.1} parent=1 // pred_check_branch
      %140 = sbr.rel (0) target = $region65
    $region64: #{tpu_custom_call.1} parent=1 // pred_region
      %142 = dma.done [#allocation15], 128
    $region65: #{tpu_custom_call.1} parent=1 // pred_fallthru
      _
    %v143 = vld [vmem:[#allocation2] sm:$0xf]
    %v144 = vld [vmem:[#allocation5] sm:$0xf]
    %v145 = vld [vmem:[#allocation5 + $0x4] sm:$0xf]
    %v146 = vld [vmem:[#allocation5 + $0x8] sm:$0xf]
    %v147 = vld [vmem:[#allocation5 + $0xc] sm:$0xf]
    %v148 = vld [vmem:[#allocation5 + $0x10] sm:$0xf]
    %v149 = vld [vmem:[#allocation5 + $0x14] sm:$0xf]
    %v150 = vld [vmem:[#allocation5 + $0x18] sm:$0xf]
    %v151 = vld [vmem:[#allocation5 + $0x1c] sm:$0xf]
    %v152 = vld [vmem:[#allocation5 + $0x20] sm:$0xf]
    %v153 = vld [vmem:[#allocation5 + $0x24] sm:$0xf]
    %v154 = vld [vmem:[#allocation5 + $0x28] sm:$0xf]
    %v155 = vld [vmem:[#allocation5 + $0x2c] sm:$0xf]
    %v156 = vld [vmem:[#allocation5 + $0x30] sm:$0xf]
    %v157 = vld [vmem:[#allocation5 + $0x34] sm:$0xf]
    %v158 = vld [vmem:[#allocation5 + $0x38] sm:$0xf]
    %v159 = vld [vmem:[#allocation5 + $0x3c] sm:$0xf]
    %v160 = vld [vmem:[#allocation7] sm:$0xf]
    %v161 = vld [vmem:[#allocation8] sm:$0xf]
    %v162 = vld [vmem:[#allocation8 + $0x4] sm:$0xf]
    %v163 = vld [vmem:[#allocation8 + $0x8] sm:$0xf]
    %v164 = vld [vmem:[#allocation8 + $0xc] sm:$0xf]
    %v165 = vld [vmem:[#allocation8 + $0x10] sm:$0xf]
    %v166 = vld [vmem:[#allocation8 + $0x14] sm:$0xf]
    %v167 = vld [vmem:[#allocation8 + $0x18] sm:$0xf]
    %v168 = vld [vmem:[#allocation8 + $0x1c] sm:$0xf]
    %v169 = vld [vmem:[#allocation8 + $0x20] sm:$0xf]
    %v170 = vld [vmem:[#allocation8 + $0x24] sm:$0xf]
    %v171 = vld [vmem:[#allocation8 + $0x28] sm:$0xf]
    %v172 = vld [vmem:[#allocation8 + $0x2c] sm:$0xf]
    %v173 = vld [vmem:[#allocation8 + $0x30] sm:$0xf]
    %v174 = vld [vmem:[#allocation8 + $0x34] sm:$0xf]
    %v175 = vld [vmem:[#allocation8 + $0x38] sm:$0xf]
    %v176 = vld [vmem:[#allocation8 + $0x3c] sm:$0xf]
    %v177 = vld [vmem:[#allocation10] sm:$0xff]
    %v194 = vunpack.c.l.b16 %v144
    %v195 = vunpack.c.l.b16 %v145
    %v196 = vunpack.c.l.b16 %v146
    %v197 = vunpack.c.l.b16 %v147
    %v198 = vunpack.c.l.b16 %v148
    %v199 = vunpack.c.l.b16 %v149
    %v200 = vunpack.c.l.b16 %v150
    %v201 = vunpack.c.l.b16 %v151
    %v202 = vunpack.c.l.b16 %v152
    %v203 = vunpack.c.l.b16 %v153
    %v204 = vunpack.c.l.b16 %v154
    %v205 = vunpack.c.l.b16 %v155
    %v206 = vunpack.c.l.b16 %v156
    %v207 = vunpack.c.l.b16 %v157
    %v208 = vunpack.c.l.b16 %v158
    %v209 = vunpack.c.l.b16 %v159
    %v210 = vpack.c.b16 %v195, %v194
    %v211 = vpack.c.b16 %v197, %v196
    %v212 = vpack.c.b16 %v199, %v198
    %v213 = vpack.c.b16 %v201, %v200
    %v214 = vpack.c.b16 %v203, %v202
    %v215 = vpack.c.b16 %v205, %v204
    %v216 = vpack.c.b16 %v207, %v206
    %v217 = vpack.c.b16 %v209, %v208
    %226 = vmatpush.bf16.msra.mxu0 %v217
    %227 = vmatpush.bf16.msra.mxu0 %v216
    %228 = vmatpush.bf16.msra.mxu0 %v215
    %229 = vmatpush.bf16.msra.mxu0 %v214
    %230 = vmatpush.bf16.msra.mxu0 %v213
    %231 = vmatpush.bf16.msra.mxu0 %v212
    %232 = vmatpush.bf16.msra.mxu0 %v211
    %233 = vmatpush.bf16.msra.mxu0 %v210
    %234 = vmatmul.bf16.gmra.mxu0 %v143
    %v235 = vpop.f32.mrf.mxu0
    %v236 = vadd.f32 %v177, %v235
    %v237 = vpop.f32.mrf.mxu0
    %238 = vdwg.mxu0
    %v239 = vld [vmem:[#allocation13] sm:$0xff]
    %v240 = vmul.f32 %v236, %v239
    %v241 = vld [vmem:[#allocation11] sm:$0xff]
    %v258 = vunpack.c.l.b16 %v161
    %v259 = vunpack.c.l.b16 %v162
    %v260 = vunpack.c.l.b16 %v163
    %v261 = vunpack.c.l.b16 %v164
    %v262 = vunpack.c.l.b16 %v165
    %v263 = vunpack.c.l.b16 %v166
    %v264 = vunpack.c.l.b16 %v167
    %v265 = vunpack.c.l.b16 %v168
    %v266 = vunpack.c.l.b16 %v169
    %v267 = vunpack.c.l.b16 %v170
    %v268 = vunpack.c.l.b16 %v171
    %v269 = vunpack.c.l.b16 %v172
    %v270 = vunpack.c.l.b16 %v173
    %v271 = vunpack.c.l.b16 %v174
    %v272 = vunpack.c.l.b16 %v175
    %v273 = vunpack.c.l.b16 %v176
    %v274 = vpack.c.b16 %v259, %v258
    %v275 = vpack.c.b16 %v261, %v260
    %v276 = vpack.c.b16 %v263, %v262
    %v277 = vpack.c.b16 %v265, %v264
    %v278 = vpack.c.b16 %v267, %v266
    %v279 = vpack.c.b16 %v269, %v268
    %v280 = vpack.c.b16 %v271, %v270
    %v281 = vpack.c.b16 %v273, %v272
    %290 = vmatpush.bf16.msra.mxu0 %v281
    %291 = vmatpush.bf16.msra.mxu0 %v280
    %292 = vmatpush.bf16.msra.mxu0 %v279
    %293 = vmatpush.bf16.msra.mxu0 %v278
    %294 = vmatpush.bf16.msra.mxu0 %v277
    %295 = vmatpush.bf16.msra.mxu0 %v276
    %296 = vmatpush.bf16.msra.mxu0 %v275
    %297 = vmatpush.bf16.msra.mxu0 %v274
    %298 = vmatmul.bf16.gmra.mxu0 %v160
    %v299 = vpop.f32.mrf.mxu0
    %v300 = vadd.f32 %v241, %v299
    %v301 = vpop.f32.mrf.mxu0
    %302 = vdwg.mxu0
    %v303 = vld [vmem:[#allocation14] sm:$0xff]
    %v304 = vmul.f32 %v300, %v303
    %v305 = vadd.f32 %v240, %v304
    %306 = vst [vmem:[#allocation16] sm:$0xff] %v305
    // Predicated region
    $region66: #{tpu_custom_call.1} parent=1 // pred_check
      _
    $region67: #{tpu_custom_call.1} parent=1 // pred_check_branch
      %308 = sbr.rel (0) target = $region69
    $region68: #{tpu_custom_call.1} parent=1 // pred_region
      %310 = vsyncadd [#allocation4], 0
      %s312 = sshll.u32 [#allocation16], 4
      %s313 = int_to_ptr.vmem [resolvable:$true] %s312
      %s314 = sshll.u32 %s8, 4
      %s315 = int_to_ptr.hbm [resolvable:$true] %s314
      %317 = dma.vmem_to_hbm [thread:$0]  %s313, 128, %s315, [#allocation4]
    $region69: #{tpu_custom_call.1} parent=1 // pred_fallthru
      _
    // Predicated region
    $region70: #{tpu_custom_call.1} parent=1 // pred_check
      _
    $region71: #{tpu_custom_call.1} parent=1 // pred_check_branch
      %319 = sbr.rel (0) target = $region73
    $region72: #{tpu_custom_call.1} parent=1 // pred_region
      %321 = dma.done [#allocation4], 128
    $region73: #{tpu_custom_call.1} parent=1 // pred_fallthru
      _
    %322 = vsyncpa [#allocation3], 1
    %323 = vsyncpa [#allocation6], 1
    %324 = vsyncpa [#allocation9], 1
    %325 = vsyncpa [#allocation12], 1
    %326 = vsyncpa [#allocation15], 1
    %327 = vsyncpa [#allocation4], 1

</llo_original>
